<compile_context>
chip_gen: v5e
topology: v5e:2x2
jax: 0.10.0
libtpu: 0.0.40
codegen_flags: <defaults>
</compile_context>

<pallas_src>
import functools

import jax
import jax.numpy as jnp
import numpy as np
from jax import lax
from jax.experimental import pallas as pl
from jax.experimental.pallas import tpu as pltpu

LANE = 128
SUBLANE = 8


def _round_up(v, m):
    return ((v + m - 1) // m) * m


def ae_kernel(x_ref, w_ref, b_ref, pz_ref, fz_ref, stats_ref, acc_ref, *, b_actual):
    """One batch-tile of the AE forward.

    x_ref    : (tb, P)     f32, zero-padded input tile
    w_ref    : (6, P, P)   bf16, VMEM-resident weight slab (in, out) per layer
    b_ref    : (8, P)      f32, bias slab (rows 0..5 used)
    pz_ref   : (tb, P)     f32 output tile (latent, pre-stats)
    fz_ref   : (tb, P)     f32 output tile (reconstruction)
    stats_ref: (8, P)      f32, row0 = sigma, row1 = mu (resident across grid)
    acc_ref  : (8, P)      f32 scratch, row0 = sum(pz), row1 = sum(pz^2)
    """
    i = pl.program_id(0)
    n_steps = pl.num_programs(0)
    tb, p = x_ref.shape

    @pl.when(i == 0)
    def _():
        acc_ref[...] = jnp.zeros_like(acc_ref)
        stats_ref[...] = jnp.zeros_like(stats_ref)

    # Whole bias slab is exactly one f32 vreg: load once, slice as a value.
    b = b_ref[...]
    x = x_ref[...].astype(jnp.bfloat16)

    def layer(a_bf16, idx, relu):
        y = jnp.dot(a_bf16, w_ref[idx], preferred_element_type=jnp.float32)
        y = y + b[idx:idx + 1, :]
        return jnp.maximum(y, 0.0) if relu else y

    # ---------------- encoder ----------------
    h1 = layer(x, 0, True)
    h2 = layer(h1.astype(jnp.bfloat16), 1, True)
    pz = layer(h2.astype(jnp.bfloat16), 2, False)

    # Masked accumulation for torch.std_mean(pz, dim=0): padded batch rows are
    # excluded (their pz is garbage = bias propagated through the encoder).
    row_ids = lax.broadcasted_iota(jnp.int32, (tb, p), 0) + i * tb
    valid = (row_ids < b_actual).astype(jnp.float32)
    pz_m = pz * valid
    acc_ref[0:1, :] += jnp.sum(pz_m, axis=0, keepdims=True)
    acc_ref[1:2, :] += jnp.sum(pz_m * pz_m, axis=0, keepdims=True)

    # ---------------- decoder ----------------
    d1 = layer(pz.astype(jnp.bfloat16), 3, True)
    d2 = layer(d1.astype(jnp.bfloat16), 4, True)
    logits = layer(d2.astype(jnp.bfloat16), 5, False)
    # sigmoid(x) = 0.5 * (1 + tanh(x/2)): single EUP push + VPU fma.
    fz = 0.5 + 0.5 * jnp.tanh(0.5 * logits)

    # Full-lane, tile-aligned stores.
    pz_ref[...] = pz
    fz_ref[...] = fz

    @pl.when(i == n_steps - 1)
    def _():
        s = acc_ref[0:1, :]
        ss = acc_ref[1:2, :]
        mu = s * (1.0 / b_actual)
        # Unbiased (ddof=1) variance; B == 1 gives NaN, matching torch.
        denom = (1.0 / (b_actual - 1)) if b_actual > 1 else float("nan")
        var = jnp.maximum((ss - s * mu) * denom, 0.0)
        stats_ref[0:1, :] = jnp.sqrt(var)
        stats_ref[1:2, :] = mu


@functools.partial(jax.jit, static_argnames=("n_input", "n_z", "tb"))
def ae_forward(x, w_slab, b_slab, *, n_input, n_z, tb=None):
    B = x.shape[0]
    P = w_slab.shape[1]

    if tb is None:
        tb = min(128, _round_up(max(B, 1), SUBLANE))
    tb = _round_up(tb, SUBLANE)
    n_tiles = (B + tb - 1) // tb
    Bp = n_tiles * tb

    # Zero-pad input to a lane/sublane-aligned (Bp, P) slab. Padded feature
    # lanes stay zero through the network (padded weight rows/cols are zero);
    # padded batch rows are masked out of the mu/sigma accumulators.
    x_pad = jnp.zeros((Bp, P), jnp.float32).at[:B, :n_input].set(x.astype(jnp.float32))

    flops = 2 * Bp * 6 * P * P
    bytes_accessed = (2 * 6 * P * P          # bf16 weight slab
                      + 4 * (8 * P)          # bias slab
                      + 4 * (Bp * P)         # input
                      + 4 * (2 * Bp * P + 8 * P))  # outputs

    grid_spec = pltpu.PrefetchScalarGridSpec(
        num_scalar_prefetch=0,
        grid=(n_tiles,),
        in_specs=[
            pl.BlockSpec((tb, P), lambda i: (i, 0)),        # x tiles stream
            pl.BlockSpec((6, P, P), lambda i: (0, 0, 0)),   # weights VMEM-resident
            pl.BlockSpec((8, P), lambda i: (0, 0)),         # biases VMEM-resident
        ],
        out_specs=[
            pl.BlockSpec((tb, P), lambda i: (i, 0)),        # pz
            pl.BlockSpec((tb, P), lambda i: (i, 0)),        # fz
            pl.BlockSpec((8, P), lambda i: (0, 0)),         # stats (sigma, mu)
        ],
        scratch_shapes=[pltpu.VMEM((8, P), jnp.float32)],   # sum / sum-sq acc
    )

    pz_out, fz_out, stats = pl.pallas_call(
        functools.partial(ae_kernel, b_actual=B),
        out_shape=(
            jax.ShapeDtypeStruct((Bp, P), jnp.float32),
            jax.ShapeDtypeStruct((Bp, P), jnp.float32),
            jax.ShapeDtypeStruct((8, P), jnp.float32),
        ),
        grid_spec=grid_spec,
        # Batch axis carries the mu/sigma accumulator -> must be sequential.
        compiler_params=pltpu.CompilerParams(dimension_semantics=("arbitrary",)),
        cost_estimate=pl.CostEstimate(
            flops=flops, transcendentals=Bp * P, bytes_accessed=bytes_accessed),
    )(x_pad, w_slab, b_slab)

    pz = pz_out[:B, :n_z]
    fz = fz_out[:B, :n_input]
    sigma = stats[0, :n_z]
    mu = stats[1, :n_z]
    return pz, fz, sigma, mu


def init_params(key, n_input, n_enc_1, n_enc_2, n_z, n_dec_1, n_dec_2):
    """Deterministic init mimicking torch.nn.Linear default (+-1/sqrt(fan_in)).
    Weights stored as (in_features, out_features)."""
    dims = [
        (n_input, n_enc_1), (n_enc_1, n_enc_2), (n_enc_2, n_z),
        (n_z, n_dec_1), (n_dec_1, n_dec_2), (n_dec_2, n_input),
    ]
    params = []
    for (fan_in, fan_out) in dims:
        key, kw, kb = jax.random.split(key, 3)
        bound = 1.0 / np.sqrt(fan_in)
        w = jax.random.uniform(kw, (fan_in, fan_out), jnp.float32, -bound, bound)
        b = jax.random.uniform(kb, (1, fan_out), jnp.float32, -bound, bound)
        params.extend([w, b])
    return tuple(params), dims


def pack_params(params, dims):
    """Pack the 6 (W, b) pairs into two lane-aligned zero-padded slabs.

    Weights go to ONE bf16 (6, P, P) slab (halves the per-call weight DMA and
    makes the MXU matmuls single-pass native bf16); biases to ONE f32 (8, P)
    slab. Done once at setup."""
    max_dim = max(max(d) for d in dims)
    P = max(LANE, _round_up(max_dim, LANE))
    w_slab = np.zeros((6, P, P), np.float32)
    b_slab = np.zeros((8, P), np.float32)
    for i, (fi, fo) in enumerate(dims):
        w_slab[i, :fi, :fo] = np.asarray(params[2 * i])
        b_slab[i, :fo] = np.asarray(params[2 * i + 1]).reshape(-1)
    return jnp.asarray(w_slab, jnp.bfloat16), jnp.asarray(b_slab, jnp.float32)


def ae_reference_f32(x, params):
    """Pure-JAX f32 reference with torch semantics."""
    (w1, b1, w2, b2, w3, b3, w4, b4, w5, b5, w6, b6) = params
    h1 = jax.nn.relu(x @ w1 + b1)
    h2 = jax.nn.relu(h1 @ w2 + b2)
    pz = h2 @ w3 + b3
    mu = jnp.mean(pz, axis=0)
    sigma = jnp.std(pz, axis=0, ddof=1)
    d1 = jax.nn.relu(pz @ w4 + b4)
    d2 = jax.nn.relu(d1 @ w5 + b5)
    fz = jax.nn.sigmoid(d2 @ w6 + b6)
    return pz, fz, sigma, mu


def ae_reference_bf16(x, params):
    """Pure-JAX reference mirroring the kernel numerics (bf16 matmul operands,
    f32 accumulation, tanh-form sigmoid)."""
    (w1, b1, w2, b2, w3, b3, w4, b4, w5, b5, w6, b6) = params

    def lin(a, w, b):
        return jnp.dot(a.astype(jnp.bfloat16), w.astype(jnp.bfloat16),
                       preferred_element_type=jnp.float32) + b

    h1 = jax.nn.relu(lin(x, w1, b1))
    h2 = jax.nn.relu(lin(h1, w2, b2))
    pz = lin(h2, w3, b3)
    mu = jnp.mean(pz, axis=0)
    sigma = jnp.std(pz, axis=0, ddof=1)
    d1 = jax.nn.relu(lin(pz, w4, b4))
    d2 = jax.nn.relu(lin(d1, w5, b5))
    fz = 0.5 + 0.5 * jnp.tanh(0.5 * lin(d2, w6, b6))
    return pz, fz, sigma, mu


def _check(x, params, w_slab, b_slab, n_input, n_z, tb=None):
    B = x.shape[0]
    pz, fz, sigma, mu = ae_forward(x, w_slab, b_slab, n_input=n_input, n_z=n_z, tb=tb)
    jax.block_until_ready((pz, fz, sigma, mu))
    assert pz.shape == (B, n_z) and fz.shape == (B, n_input)
    assert sigma.shape == (n_z,) and mu.shape == (n_z,)

    # Tight check vs a reference with matching (bf16-operand) numerics.
    pz_b, fz_b, sg_b, mu_b = ae_reference_bf16(x, params)
    np.testing.assert_allclose(np.asarray(pz), np.asarray(pz_b), rtol=3e-3, atol=3e-3)
    np.testing.assert_allclose(np.asarray(fz), np.asarray(fz_b), rtol=3e-3, atol=3e-3)
    np.testing.assert_allclose(np.asarray(mu), np.asarray(mu_b), rtol=3e-3, atol=3e-3)
    np.testing.assert_allclose(np.asarray(sigma), np.asarray(sg_b), rtol=3e-3, atol=3e-3)

    # Loose check vs the f32 torch-semantics reference (bf16 weight rounding).
    pz_r, fz_r, sg_r, mu_r = ae_reference_f32(x, params)
    np.testing.assert_allclose(np.asarray(pz), np.asarray(pz_r), rtol=5e-2, atol=5e-2)
    np.testing.assert_allclose(np.asarray(fz), np.asarray(fz_r), rtol=5e-2, atol=5e-2)
    np.testing.assert_allclose(np.asarray(mu), np.asarray(mu_r), rtol=5e-2, atol=5e-2)
    np.testing.assert_allclose(np.asarray(sigma), np.asarray(sg_r), rtol=5e-2, atol=5e-2)


if __name__ == "__main__":
    # Small MLP autoencoder sizes implied by the module's __init__.
    n_input, n_enc_1, n_enc_2 = 32, 64, 32
    n_z, n_dec_1, n_dec_2 = 16, 32, 64

    key = jax.random.PRNGKey(0)
    key, kx1, kx2 = jax.random.split(key, 3)
    params, dims = init_params(key, n_input, n_enc_1, n_enc_2, n_z, n_dec_1, n_dec_2)
    w_slab, b_slab = pack_params(params, dims)

    # Case 1: small batch, single grid step.
    x1 = jax.random.normal(kx1, (8, n_input), jnp.float32)
    _check(x1, params, w_slab, b_slab, n_input, n_z)

    # Case 2: non-multiple-of-8 batch with tb=8 -> 6 grid steps; exercises the
    # VMEM-resident weights, the carried mu/sigma accumulator and row masking.
    x2 = jax.random.normal(kx2, (41, n_input), jnp.float32)
    _check(x2, params, w_slab, b_slab, n_input, n_z, tb=8)

    print("KERNEL_OK")
</pallas_src>

<mosaic_0001>
module attributes {stable_mosaic.version = 11 : i64} {
  func.func @ae_kernel(%arg0: i32, %arg1: memref<8x128xf32, #tpu.memory_space<vmem>>, %arg2: memref<6x128x128xbf16, #tpu.memory_space<vmem>>, %arg3: memref<8x128xf32, #tpu.memory_space<vmem>>, %arg4: memref<8x128xf32, #tpu.memory_space<vmem>>, %arg5: memref<8x128xf32, #tpu.memory_space<vmem>>, %arg6: memref<8x128xf32, #tpu.memory_space<vmem>>, %arg7: memref<8x128xf32, #tpu.memory_space<vmem>>) attributes {dimension_semantics = [#tpu.dimension_semantics<arbitrary>], iteration_bounds = array<i64: 1>, scalar_prefetch = 0 : i64, scratch_operands = 1 : i64, tpu.core_type = #tpu.core_type<tc>, window_params = [{transform_indices = @transform_0, window_bounds = array<i64: 8, 128>}, {pipeline_mode = #tpu.pipeline_mode<synchronous>, transform_indices = @transform_1, window_bounds = array<i64: 6, 128, 128>}, {pipeline_mode = #tpu.pipeline_mode<synchronous>, transform_indices = @transform_2, window_bounds = array<i64: 8, 128>}, {transform_indices = @transform_3, window_bounds = array<i64: 8, 128>}, {transform_indices = @transform_4, window_bounds = array<i64: 8, 128>}, {pipeline_mode = #tpu.pipeline_mode<synchronous>, transform_indices = @transform_5, window_bounds = array<i64: 8, 128>}]} {
    %c0_i32 = arith.constant 0 : i32
    %0 = arith.cmpi eq, %arg0, %c0_i32 : i32
    %1 = arith.extui %0 : i1 to i32
    %c0_i32_0 = arith.constant 0 : i32
    %2 = arith.cmpi ne, %1, %c0_i32_0 : i32
    scf.if %2 {
      %cst_46 = arith.constant 0.000000e+00 : f32
      %87 = vector.broadcast %cst_46 : f32 to vector<8x128xf32>
      %c0_47 = arith.constant 0 : index
      %c0_48 = arith.constant 0 : index
      %88 = vector.load %arg7[%c0_47, %c0_48] : memref<8x128xf32, #tpu.memory_space<vmem>>, vector<8x128xf32>
      tpu.vector_store %arg7[%c0_47, %c0_48], %87 {strides = array<i32>} : memref<8x128xf32, #tpu.memory_space<vmem>>, vector<8x128xf32>,
      %cst_49 = arith.constant 0.000000e+00 : f32
      %89 = vector.broadcast %cst_49 : f32 to vector<8x128xf32>
      %c0_50 = arith.constant 0 : index
      %c0_51 = arith.constant 0 : index
      %90 = vector.load %arg6[%c0_50, %c0_51] : memref<8x128xf32, #tpu.memory_space<vmem>>, vector<8x128xf32>
      tpu.vector_store %arg6[%c0_50, %c0_51], %89 {strides = array<i32>} : memref<8x128xf32, #tpu.memory_space<vmem>>, vector<8x128xf32>,
    } else {
    }
    %c0 = arith.constant 0 : index
    %c0_1 = arith.constant 0 : index
    %3 = vector.load %arg3[%c0, %c0_1] : memref<8x128xf32, #tpu.memory_space<vmem>>, vector<8x128xf32>
    %c0_2 = arith.constant 0 : index
    %c0_3 = arith.constant 0 : index
    %4 = vector.load %arg1[%c0_2, %c0_3] : memref<8x128xf32, #tpu.memory_space<vmem>>, vector<8x128xf32>
    %5 = arith.truncf %4 : vector<8x128xf32> to vector<8x128xbf16>
    %c0_4 = arith.constant 0 : index
    %c0_5 = arith.constant 0 : index
    %c0_6 = arith.constant 0 : index
    %6 = vector.load %arg2[%c0_4, %c0_5, %c0_6] : memref<6x128x128xbf16, #tpu.memory_space<vmem>>, vector<1x128x128xbf16>
    %7 = vector.shape_cast %6 : vector<1x128x128xbf16> to vector<128x128xbf16>
    %cst = arith.constant dense<0.000000e+00> : vector<8x128xf32>
    %8 = tpu.matmul %5, %7, %cst {dimension_numbers = #tpu.dot_dimension_numbers<[1], [0], [0], [1], [0, 0, 1, 1], [], []>} : vector<8x128xbf16>, vector<128x128xbf16>, vector<8x128xf32> -> vector<8x128xf32>
    %9 = vector.extract_strided_slice %3 {offsets = [0, 0], sizes = [1, 128], strides = [1, 1]} : vector<8x128xf32> to vector<1x128xf32>
    %10 = vector.broadcast %9 : vector<1x128xf32> to vector<8x128xf32>
    %11 = arith.addf %8, %10 : vector<8x128xf32>
    %cst_7 = arith.constant 0.000000e+00 : f32
    %12 = vector.broadcast %cst_7 : f32 to vector<8x128xf32>
    %13 = arith.maximumf %11, %12 : vector<8x128xf32>
    %14 = arith.truncf %13 : vector<8x128xf32> to vector<8x128xbf16>
    %c1 = arith.constant 1 : index
    %c0_8 = arith.constant 0 : index
    %c0_9 = arith.constant 0 : index
    %15 = vector.load %arg2[%c1, %c0_8, %c0_9] : memref<6x128x128xbf16, #tpu.memory_space<vmem>>, vector<1x128x128xbf16>
    %16 = vector.shape_cast %15 : vector<1x128x128xbf16> to vector<128x128xbf16>
    %cst_10 = arith.constant dense<0.000000e+00> : vector<8x128xf32>
    %17 = tpu.matmul %14, %16, %cst_10 {dimension_numbers = #tpu.dot_dimension_numbers<[1], [0], [0], [1], [0, 0, 1, 1], [], []>} : vector<8x128xbf16>, vector<128x128xbf16>, vector<8x128xf32> -> vector<8x128xf32>
    %18 = vector.extract_strided_slice %3 {offsets = [1, 0], sizes = [1, 128], strides = [1, 1]} : vector<8x128xf32> to vector<1x128xf32>
    %19 = vector.broadcast %18 : vector<1x128xf32> to vector<8x128xf32>
    %20 = arith.addf %17, %19 : vector<8x128xf32>
    %cst_11 = arith.constant 0.000000e+00 : f32
    %21 = vector.broadcast %cst_11 : f32 to vector<8x128xf32>
    %22 = arith.maximumf %20, %21 : vector<8x128xf32>
    %23 = arith.truncf %22 : vector<8x128xf32> to vector<8x128xbf16>
    %c2 = arith.constant 2 : index
    %c0_12 = arith.constant 0 : index
    %c0_13 = arith.constant 0 : index
    %24 = vector.load %arg2[%c2, %c0_12, %c0_13] : memref<6x128x128xbf16, #tpu.memory_space<vmem>>, vector<1x128x128xbf16>
    %25 = vector.shape_cast %24 : vector<1x128x128xbf16> to vector<128x128xbf16>
    %cst_14 = arith.constant dense<0.000000e+00> : vector<8x128xf32>
    %26 = tpu.matmul %23, %25, %cst_14 {dimension_numbers = #tpu.dot_dimension_numbers<[1], [0], [0], [1], [0, 0, 1, 1], [], []>} : vector<8x128xbf16>, vector<128x128xbf16>, vector<8x128xf32> -> vector<8x128xf32>
    %27 = vector.extract_strided_slice %3 {offsets = [2, 0], sizes = [1, 128], strides = [1, 1]} : vector<8x128xf32> to vector<1x128xf32>
    %28 = vector.broadcast %27 : vector<1x128xf32> to vector<8x128xf32>
    %29 = arith.addf %26, %28 : vector<8x128xf32>
    %30 = tpu.iota {dimensions = array<i32: 0>} : vector<8x128xi32>
    %c8_i32 = arith.constant 8 : i32
    %31 = arith.muli %arg0, %c8_i32 : i32
    %32 = vector.broadcast %31 : i32 to vector<8x128xi32>
    %33 = arith.addi %30, %32 : vector<8x128xi32>
    %c8_i32_15 = arith.constant 8 : i32
    %34 = vector.broadcast %c8_i32_15 : i32 to vector<8x128xi32>
    %35 = arith.cmpi slt, %33, %34 : vector<8x128xi32>
    %36 = arith.extui %35 : vector<8x128xi1> to vector<8x128xi32>
    %37 = arith.sitofp %36 : vector<8x128xi32> to vector<8x128xf32>
    %38 = arith.mulf %29, %37 : vector<8x128xf32>
    %c0_16 = arith.constant 0 : index
    %c0_17 = arith.constant 0 : index
    %39 = vector.load %arg7[%c0_16, %c0_17] : memref<8x128xf32, #tpu.memory_space<vmem>>, vector<1x128xf32>
    %cst_18 = arith.constant dense<0.000000e+00> : vector<128xf32>
    %40 = vector.multi_reduction <add>, %38, %cst_18 [0] : vector<8x128xf32> to vector<128xf32>
    %41 = vector.shape_cast %40 : vector<128xf32> to vector<1x128xf32>
    %42 = arith.addf %39, %41 : vector<1x128xf32>
    %c0_19 = arith.constant 0 : index
    %c0_20 = arith.constant 0 : index
    %43 = vector.load %arg7[%c0_19, %c0_20] : memref<8x128xf32, #tpu.memory_space<vmem>>, vector<1x128xf32>
    tpu.vector_store %arg7[%c0_19, %c0_20], %42 {strides = array<i32>} : memref<8x128xf32, #tpu.memory_space<vmem>>, vector<1x128xf32>,
    %c1_21 = arith.constant 1 : index
    %c0_22 = arith.constant 0 : index
    %44 = vector.load %arg7[%c1_21, %c0_22] : memref<8x128xf32, #tpu.memory_space<vmem>>, vector<1x128xf32>
    %45 = arith.mulf %38, %38 : vector<8x128xf32>
    %cst_23 = arith.constant dense<0.000000e+00> : vector<128xf32>
    %46 = vector.multi_reduction <add>, %45, %cst_23 [0] : vector<8x128xf32> to vector<128xf32>
    %47 = vector.shape_cast %46 : vector<128xf32> to vector<1x128xf32>
    %48 = arith.addf %44, %47 : vector<1x128xf32>
    %c1_24 = arith.constant 1 : index
    %c0_25 = arith.constant 0 : index
    %49 = vector.load %arg7[%c1_24, %c0_25] : memref<8x128xf32, #tpu.memory_space<vmem>>, vector<1x128xf32>
    tpu.vector_store %arg7[%c1_24, %c0_25], %48 {strides = array<i32>} : memref<8x128xf32, #tpu.memory_space<vmem>>, vector<1x128xf32>,
    %50 = arith.truncf %29 : vector<8x128xf32> to vector<8x128xbf16>
    %c3 = arith.constant 3 : index
    %c0_26 = arith.constant 0 : index
    %c0_27 = arith.constant 0 : index
    %51 = vector.load %arg2[%c3, %c0_26, %c0_27] : memref<6x128x128xbf16, #tpu.memory_space<vmem>>, vector<1x128x128xbf16>
    %52 = vector.shape_cast %51 : vector<1x128x128xbf16> to vector<128x128xbf16>
    %cst_28 = arith.constant dense<0.000000e+00> : vector<8x128xf32>
    %53 = tpu.matmul %50, %52, %cst_28 {dimension_numbers = #tpu.dot_dimension_numbers<[1], [0], [0], [1], [0, 0, 1, 1], [], []>} : vector<8x128xbf16>, vector<128x128xbf16>, vector<8x128xf32> -> vector<8x128xf32>
    %54 = vector.extract_strided_slice %3 {offsets = [3, 0], sizes = [1, 128], strides = [1, 1]} : vector<8x128xf32> to vector<1x128xf32>
    %55 = vector.broadcast %54 : vector<1x128xf32> to vector<8x128xf32>
    %56 = arith.addf %53, %55 : vector<8x128xf32>
    %cst_29 = arith.constant 0.000000e+00 : f32
    %57 = vector.broadcast %cst_29 : f32 to vector<8x128xf32>
    %58 = arith.maximumf %56, %57 : vector<8x128xf32>
    %59 = arith.truncf %58 : vector<8x128xf32> to vector<8x128xbf16>
    %c4 = arith.constant 4 : index
    %c0_30 = arith.constant 0 : index
    %c0_31 = arith.constant 0 : index
    %60 = vector.load %arg2[%c4, %c0_30, %c0_31] : memref<6x128x128xbf16, #tpu.memory_space<vmem>>, vector<1x128x128xbf16>
    %61 = vector.shape_cast %60 : vector<1x128x128xbf16> to vector<128x128xbf16>
    %cst_32 = arith.constant dense<0.000000e+00> : vector<8x128xf32>
    %62 = tpu.matmul %59, %61, %cst_32 {dimension_numbers = #tpu.dot_dimension_numbers<[1], [0], [0], [1], [0, 0, 1, 1], [], []>} : vector<8x128xbf16>, vector<128x128xbf16>, vector<8x128xf32> -> vector<8x128xf32>
    %63 = vector.extract_strided_slice %3 {offsets = [4, 0], sizes = [1, 128], strides = [1, 1]} : vector<8x128xf32> to vector<1x128xf32>
    %64 = vector.broadcast %63 : vector<1x128xf32> to vector<8x128xf32>
    %65 = arith.addf %62, %64 : vector<8x128xf32>
    %cst_33 = arith.constant 0.000000e+00 : f32
    %66 = vector.broadcast %cst_33 : f32 to vector<8x128xf32>
    %67 = arith.maximumf %65, %66 : vector<8x128xf32>
    %68 = arith.truncf %67 : vector<8x128xf32> to vector<8x128xbf16>
    %c5 = arith.constant 5 : index
    %c0_34 = arith.constant 0 : index
    %c0_35 = arith.constant 0 : index
    %69 = vector.load %arg2[%c5, %c0_34, %c0_35] : memref<6x128x128xbf16, #tpu.memory_space<vmem>>, vector<1x128x128xbf16>
    %70 = vector.shape_cast %69 : vector<1x128x128xbf16> to vector<128x128xbf16>
    %cst_36 = arith.constant dense<0.000000e+00> : vector<8x128xf32>
    %71 = tpu.matmul %68, %70, %cst_36 {dimension_numbers = #tpu.dot_dimension_numbers<[1], [0], [0], [1], [0, 0, 1, 1], [], []>} : vector<8x128xbf16>, vector<128x128xbf16>, vector<8x128xf32> -> vector<8x128xf32>
    %72 = vector.extract_strided_slice %3 {offsets = [5, 0], sizes = [1, 128], strides = [1, 1]} : vector<8x128xf32> to vector<1x128xf32>
    %73 = vector.broadcast %72 : vector<1x128xf32> to vector<8x128xf32>
    %74 = arith.addf %71, %73 : vector<8x128xf32>
    %cst_37 = arith.constant 5.000000e-01 : f32
    %75 = vector.broadcast %cst_37 : f32 to vector<8x128xf32>
    %76 = arith.mulf %75, %74 : vector<8x128xf32>
    %77 = math.tanh %76 : vector<8x128xf32>
    %cst_38 = arith.constant 5.000000e-01 : f32
    %78 = vector.broadcast %cst_38 : f32 to vector<8x128xf32>
    %79 = arith.mulf %78, %77 : vector<8x128xf32>
    %cst_39 = arith.constant 5.000000e-01 : f32
    %80 = vector.broadcast %cst_39 : f32 to vector<8x128xf32>
    %81 = arith.addf %80, %79 : vector<8x128xf32>
    %c0_40 = arith.constant 0 : index
    %c0_41 = arith.constant 0 : index
    %82 = vector.load %arg4[%c0_40, %c0_41] : memref<8x128xf32, #tpu.memory_space<vmem>>, vector<8x128xf32>
    tpu.vector_store %arg4[%c0_40, %c0_41], %29 {strides = array<i32>} : memref<8x128xf32, #tpu.memory_space<vmem>>, vector<8x128xf32>,
    %c0_42 = arith.constant 0 : index
    %c0_43 = arith.constant 0 : index
    %83 = vector.load %arg5[%c0_42, %c0_43] : memref<8x128xf32, #tpu.memory_space<vmem>>, vector<8x128xf32>
    tpu.vector_store %arg5[%c0_42, %c0_43], %81 {strides = array<i32>} : memref<8x128xf32, #tpu.memory_space<vmem>>, vector<8x128xf32>,
    %c0_i32_44 = arith.constant 0 : i32
    %84 = arith.cmpi eq, %arg0, %c0_i32_44 : i32
    %85 = arith.extui %84 : i1 to i32
    %c0_i32_45 = arith.constant 0 : i32
    %86 = arith.cmpi ne, %85, %c0_i32_45 : i32
    scf.if %86 {
      %c0_46 = arith.constant 0 : index
      %c0_47 = arith.constant 0 : index
      %87 = vector.load %arg7[%c0_46, %c0_47] : memref<8x128xf32, #tpu.memory_space<vmem>>, vector<1x128xf32>
      %c1_48 = arith.constant 1 : index
      %c0_49 = arith.constant 0 : index
      %88 = vector.load %arg7[%c1_48, %c0_49] : memref<8x128xf32, #tpu.memory_space<vmem>>, vector<1x128xf32>
      %cst_50 = arith.constant 1.250000e-01 : f32
      %89 = vector.broadcast %cst_50 : f32 to vector<1x128xf32>
      %90 = arith.mulf %87, %89 : vector<1x128xf32>
      %91 = arith.mulf %87, %90 : vector<1x128xf32>
      %92 = arith.subf %88, %91 : vector<1x128xf32>
      %cst_51 = arith.constant 0.142857149 : f32
      %93 = vector.broadcast %cst_51 : f32 to vector<1x128xf32>
      %94 = arith.mulf %92, %93 : vector<1x128xf32>
      %cst_52 = arith.constant 0.000000e+00 : f32
      %95 = vector.broadcast %cst_52 : f32 to vector<1x128xf32>
      %96 = arith.maximumf %94, %95 : vector<1x128xf32>
      %97 = math.sqrt %96 : vector<1x128xf32>
      %c0_53 = arith.constant 0 : index
      %c0_54 = arith.constant 0 : index
      %98 = vector.load %arg6[%c0_53, %c0_54] : memref<8x128xf32, #tpu.memory_space<vmem>>, vector<1x128xf32>
      tpu.vector_store %arg6[%c0_53, %c0_54], %97 {strides = array<i32>} : memref<8x128xf32, #tpu.memory_space<vmem>>, vector<1x128xf32>,
      %c1_55 = arith.constant 1 : index
      %c0_56 = arith.constant 0 : index
      %99 = vector.load %arg6[%c1_55, %c0_56] : memref<8x128xf32, #tpu.memory_space<vmem>>, vector<1x128xf32>
      tpu.vector_store %arg6[%c1_55, %c0_56], %90 {strides = array<i32>} : memref<8x128xf32, #tpu.memory_space<vmem>>, vector<1x128xf32>,
    } else {
    }
    return
  }
  func.func @transform_0(%arg0: i32) -> (i32, i32) {
    %c0_i32 = arith.constant 0 : i32
    %c0_i32_0 = arith.constant 0 : i32
    return %arg0, %c0_i32 : i32, i32
  }
  func.func @transform_1(%arg0: i32) -> (i32, i32, i32) {
    %c0_i32 = arith.constant 0 : i32
    %c0_i32_0 = arith.constant 0 : i32
    %c0_i32_1 = arith.constant 0 : i32
    %c0_i32_2 = arith.constant 0 : i32
    return %c0_i32, %c0_i32_0, %c0_i32_1 : i32, i32, i32
  }
  func.func @transform_2(%arg0: i32) -> (i32, i32) {
    %c0_i32 = arith.constant 0 : i32
    %c0_i32_0 = arith.constant 0 : i32
    %c0_i32_1 = arith.constant 0 : i32
    return %c0_i32, %c0_i32_0 : i32, i32
  }
  func.func @transform_3(%arg0: i32) -> (i32, i32) {
    %c0_i32 = arith.constant 0 : i32
    %c0_i32_0 = arith.constant 0 : i32
    return %arg0, %c0_i32 : i32, i32
  }
  func.func @transform_4(%arg0: i32) -> (i32, i32) {
    %c0_i32 = arith.constant 0 : i32
    %c0_i32_0 = arith.constant 0 : i32
    return %arg0, %c0_i32 : i32, i32
  }
  func.func @transform_5(%arg0: i32) -> (i32, i32) {
    %c0_i32 = arith.constant 0 : i32
    %c0_i32_0 = arith.constant 0 : i32
    %c0_i32_1 = arith.constant 0 : i32
    return %c0_i32, %c0_i32_0 : i32, i32
  }
}

</mosaic_0001>

<llo_original>
// kernel: ae_forward.1
$region0: #{ae_forward.1}
  #allocation0 [shape = 'u32[]', space=smem, size = 0x4, offset = 0x4, fixed_abs, tag = 'smem constant byte address 0x4 - core index']
  #allocation1 [shape = 'u32[72,128]{1,0:T(1,128)}', space=vmem, size = 0x9000, scoped, tag = 'internal scratch']
  #allocation2 [shape = 'f32[8,128]{1,0:T(8,128)}', space=vmem, size = 0x1000, scoped, tag = 'scratch operand']
  %s0 = inlined_call_operand.vmem [shape: f32[8,128], index: 0, kind: input, shape index: {}]
  %s1 = inlined_call_operand.hbm [shape: bf16[6,128,128], index: 1, kind: input, shape index: {}]
  %s2 = inlined_call_operand.vmem [shape: f32[8,128], index: 2, kind: input, shape index: {}]
  %s3 = inlined_call_operand.hbm [shape: f32[8,128], index: 3, kind: output, shape index: {0}]
  %s4 = inlined_call_operand.hbm [shape: f32[8,128], index: 4, kind: output, shape index: {1}]
  %s5 = inlined_call_operand.vmem [shape: f32[8,128], index: 5, kind: output, shape index: {2}]
  %6 = xla_tuple %s3, %s4, %s5
  %s7 = sld [smem:[#allocation0]]
  $region50: #{ae_forward.1} parent=0
    _
  %s9 = ssub.s32 1, %s7
  %s10 = scalar_select 0, %s9, %s7
  $region1: #{ae_forward.1} parent=0
    #allocation3 [shape = 'u8[196608]{0}', space=vmem, size = 0x30000, scoped, tag = 'input window, operand 1, single buffered']
    #allocation4 [shape = 's32[1]{0}', space=sflag, size = 0x4, scoped, tag = 'scoped memory for ae_forward.1']
    #allocation5 [shape = 's32[1]{0}', space=sflag, size = 0x4, scoped, tag = 'scoped memory for ae_forward.1']
    #allocation6 [shape = 'u8[4096]{0}', space=vmem, size = 0x1000, scoped, tag = 'output window, operand 0, single buffered']
    #allocation7 [shape = 'u8[4096]{0}', space=vmem, size = 0x1000, scoped, tag = 'output window, operand 1, single buffered']
    #allocation8 [shape = 's32[1]{0}', space=sflag, size = 0x4, scoped, tag = 'scoped memory for ae_forward.1']
    %11 = vsyncpa [#allocation4], 0
    %12 = vsyncpa [#allocation5], 0
    %13 = vsyncpa [#allocation8], 0
    // Predicated region
    $region2: #{ae_forward.1} parent=1 // pred_check
      _
    $region3: #{ae_forward.1} parent=1 // pred_check_branch
      %15 = sbr.rel (0) target = $region5
    $region4: #{ae_forward.1} parent=1 // pred_region
      _
    $region5: #{ae_forward.1} parent=1 // pred_fallthru
      _
    // Predicated region
    $region6: #{ae_forward.1} parent=1 // pred_check
      _
    $region7: #{ae_forward.1} parent=1 // pred_check_branch
      %17 = sbr.rel (0) target = $region9
    $region8: #{ae_forward.1} parent=1 // pred_region
      %19 = vsyncadd [#allocation4], 0
      %s20 = sshll.u32 %s1, 4
      %s21 = int_to_ptr.hbm [resolvable:$true] %s20
      %s22 = sshll.u32 [#allocation3], 4
      %s23 = int_to_ptr.vmem [resolvable:$true] %s22
      %28 = dma.hbm_to_vmem [thread:$0]  %s21, 6144, %s23, [#allocation4], 64, 64, 4
    $region9: #{ae_forward.1} parent=1 // pred_fallthru
      _
    // Predicated region
    $region10: #{ae_forward.1} parent=1 // pred_check
      _
    $region11: #{ae_forward.1} parent=1 // pred_check_branch
      %30 = sbr.rel (0) target = $region13
    $region12: #{ae_forward.1} parent=1 // pred_region
      _
    $region13: #{ae_forward.1} parent=1 // pred_fallthru
      _
    // Predicated region
    $region14: #{ae_forward.1} parent=1 // pred_check
      _
    $region15: #{ae_forward.1} parent=1 // pred_check_branch
      %32 = sbr.rel (0) target = $region17
    $region16: #{ae_forward.1} parent=1 // pred_region
      %34 = dma.done [#allocation4], 6144
    $region17: #{ae_forward.1} parent=1 // pred_fallthru
      _
    %p35 = scmp.eq.s32.totalorder 0, 0
    // Predicated region
    $region18: #{ae_forward.1} parent=1 // pred_check
      %p36 = pneg %p35
    $region19: #{ae_forward.1} parent=1 // pred_check_branch
      %38 = sbr.rel (%p36) target = $region21
    $region20: #{ae_forward.1} parent=1 // pred_region
      %39 = vst [vmem:[#allocation2] sm:$0xff] 0.0
      %40 = vst [vmem:[%s5] sm:$0xff] 0.0
    $region21: #{ae_forward.1} parent=1 // pred_fallthru
      _
    %v41 = vld [vmem:[%s2] sm:$0xff]
    %v42 = vld [vmem:[%s0] sm:$0xff]
    %v43 = vpack.c.bf16 %v42, %v42
    %v44 = vld [vmem:[#allocation3] sm:$0xf]
    %v45 = vld [vmem:[#allocation3 + $0x4] sm:$0xf]
    %v46 = vld [vmem:[#allocation3 + $0x8] sm:$0xf]
    %v47 = vld [vmem:[#allocation3 + $0xc] sm:$0xf]
    %v48 = vld [vmem:[#allocation3 + $0x10] sm:$0xf]
    %v49 = vld [vmem:[#allocation3 + $0x14] sm:$0xf]
    %v50 = vld [vmem:[#allocation3 + $0x18] sm:$0xf]
    %v51 = vld [vmem:[#allocation3 + $0x1c] sm:$0xf]
    %v52 = vld [vmem:[#allocation3 + $0x20] sm:$0xf]
    %v53 = vld [vmem:[#allocation3 + $0x24] sm:$0xf]
    %v54 = vld [vmem:[#allocation3 + $0x28] sm:$0xf]
    %v55 = vld [vmem:[#allocation3 + $0x2c] sm:$0xf]
    %v56 = vld [vmem:[#allocation3 + $0x30] sm:$0xf]
    %v57 = vld [vmem:[#allocation3 + $0x34] sm:$0xf]
    %v58 = vld [vmem:[#allocation3 + $0x38] sm:$0xf]
    %v59 = vld [vmem:[#allocation3 + $0x3c] sm:$0xf]
    %v60 = vperm.slane %v41, 0
    %v77 = vunpack.c.l.b16 %v44
    %v78 = vunpack.c.l.b16 %v45
    %v79 = vunpack.c.l.b16 %v46
    %v80 = vunpack.c.l.b16 %v47
    %v81 = vunpack.c.l.b16 %v48
    %v82 = vunpack.c.l.b16 %v49
    %v83 = vunpack.c.l.b16 %v50
    %v84 = vunpack.c.l.b16 %v51
    %v85 = vunpack.c.l.b16 %v52
    %v86 = vunpack.c.l.b16 %v53
    %v87 = vunpack.c.l.b16 %v54
    %v88 = vunpack.c.l.b16 %v55
    %v89 = vunpack.c.l.b16 %v56
    %v90 = vunpack.c.l.b16 %v57
    %v91 = vunpack.c.l.b16 %v58
    %v92 = vunpack.c.l.b16 %v59
    %v93 = vpack.c.b16 %v78, %v77
    %v94 = vpack.c.b16 %v80, %v79
    %v95 = vpack.c.b16 %v82, %v81
    %v96 = vpack.c.b16 %v84, %v83
    %v97 = vpack.c.b16 %v86, %v85
    %v98 = vpack.c.b16 %v88, %v87
    %v99 = vpack.c.b16 %v90, %v89
    %v100 = vpack.c.b16 %v92, %v91
    %109 = vmatpush.bf16.msra.mxu0 %v100
    %110 = vmatpush.bf16.msra.mxu0 %v99
    %111 = vmatpush.bf16.msra.mxu0 %v98
    %112 = vmatpush.bf16.msra.mxu0 %v97
    %113 = vmatpush.bf16.msra.mxu0 %v96
    %114 = vmatpush.bf16.msra.mxu0 %v95
    %115 = vmatpush.bf16.msra.mxu0 %v94
    %116 = vmatpush.bf16.msra.mxu0 %v93
    %117 = vmatmul.bf16.gmra.mxu0 %v43
    %v118 = vpop.f32.mrf.mxu0
    %v119 = vadd.f32 %v60, %v118
    %v120 = vpop.f32.mrf.mxu0
    %121 = vdwg.mxu0
    %v122 = vmax.f32 %v119, 0.0
    %v123 = vpack.c.bf16 %v122, %v122
    %s124 = scalar_lea.vmem [#allocation3], 64
    %v125 = vld [vmem:[%s124] sm:$0xf]
    %v126 = vld [vmem:[%s124 + $0x4] sm:$0xf]
    %v127 = vld [vmem:[%s124 + $0x8] sm:$0xf]
    %v128 = vld [vmem:[%s124 + $0xc] sm:$0xf]
    %v129 = vld [vmem:[%s124 + $0x10] sm:$0xf]
    %v130 = vld [vmem:[%s124 + $0x14] sm:$0xf]
    %v131 = vld [vmem:[%s124 + $0x18] sm:$0xf]
    %v132 = vld [vmem:[%s124 + $0x1c] sm:$0xf]
    %v133 = vld [vmem:[%s124 + $0x20] sm:$0xf]
    %v134 = vld [vmem:[%s124 + $0x24] sm:$0xf]
    %v135 = vld [vmem:[%s124 + $0x28] sm:$0xf]
    %v136 = vld [vmem:[%s124 + $0x2c] sm:$0xf]
    %v137 = vld [vmem:[%s124 + $0x30] sm:$0xf]
    %v138 = vld [vmem:[%s124 + $0x34] sm:$0xf]
    %v139 = vld [vmem:[%s124 + $0x38] sm:$0xf]
    %v140 = vld [vmem:[%s124 + $0x3c] sm:$0xf]
    %v141 = vperm.slane %v41, 1
    %v158 = vunpack.c.l.b16 %v125
    %v159 = vunpack.c.l.b16 %v126
    %v160 = vunpack.c.l.b16 %v127
    %v161 = vunpack.c.l.b16 %v128
    %v162 = vunpack.c.l.b16 %v129
    %v163 = vunpack.c.l.b16 %v130
    %v164 = vunpack.c.l.b16 %v131
    %v165 = vunpack.c.l.b16 %v132
    %v166 = vunpack.c.l.b16 %v133
    %v167 = vunpack.c.l.b16 %v134
    %v168 = vunpack.c.l.b16 %v135
    %v169 = vunpack.c.l.b16 %v136
    %v170 = vunpack.c.l.b16 %v137
    %v171 = vunpack.c.l.b16 %v138
    %v172 = vunpack.c.l.b16 %v139
    %v173 = vunpack.c.l.b16 %v140
    %v174 = vpack.c.b16 %v159, %v158
    %v175 = vpack.c.b16 %v161, %v160
    %v176 = vpack.c.b16 %v163, %v162
    %v177 = vpack.c.b16 %v165, %v164
    %v178 = vpack.c.b16 %v167, %v166
    %v179 = vpack.c.b16 %v169, %v168
    %v180 = vpack.c.b16 %v171, %v170
    %v181 = vpack.c.b16 %v173, %v172
    %190 = vmatpush.bf16.msra.mxu0 %v181
    %191 = vmatpush.bf16.msra.mxu0 %v180
    %192 = vmatpush.bf16.msra.mxu0 %v179
    %193 = vmatpush.bf16.msra.mxu0 %v178
    %194 = vmatpush.bf16.msra.mxu0 %v177
    %195 = vmatpush.bf16.msra.mxu0 %v176
    %196 = vmatpush.bf16.msra.mxu0 %v175
    %197 = vmatpush.bf16.msra.mxu0 %v174
    %198 = vmatmul.bf16.gmra.mxu0 %v123
    %v199 = vpop.f32.mrf.mxu0
    %v200 = vadd.f32 %v141, %v199
    %v201 = vpop.f32.mrf.mxu0
    %202 = vdwg.mxu0
    %v203 = vmax.f32 %v200, 0.0
    %v204 = vpack.c.bf16 %v203, %v203
    %s205 = scalar_lea.vmem [#allocation3], 128
    %v206 = vld [vmem:[%s205] sm:$0xf]
    %v207 = vld [vmem:[%s205 + $0x4] sm:$0xf]
    %v208 = vld [vmem:[%s205 + $0x8] sm:$0xf]
    %v209 = vld [vmem:[%s205 + $0xc] sm:$0xf]
    %v210 = vld [vmem:[%s205 + $0x10] sm:$0xf]
    %v211 = vld [vmem:[%s205 + $0x14] sm:$0xf]
    %v212 = vld [vmem:[%s205 + $0x18] sm:$0xf]
    %v213 = vld [vmem:[%s205 + $0x1c] sm:$0xf]
    %v214 = vld [vmem:[%s205 + $0x20] sm:$0xf]
    %v215 = vld [vmem:[%s205 + $0x24] sm:$0xf]
    %v216 = vld [vmem:[%s205 + $0x28] sm:$0xf]
    %v217 = vld [vmem:[%s205 + $0x2c] sm:$0xf]
    %v218 = vld [vmem:[%s205 + $0x30] sm:$0xf]
    %v219 = vld [vmem:[%s205 + $0x34] sm:$0xf]
    %v220 = vld [vmem:[%s205 + $0x38] sm:$0xf]
    %v221 = vld [vmem:[%s205 + $0x3c] sm:$0xf]
    %v222 = vperm.slane %v41, 2
    %v239 = vunpack.c.l.b16 %v206
    %v240 = vunpack.c.l.b16 %v207
    %v241 = vunpack.c.l.b16 %v208
    %v242 = vunpack.c.l.b16 %v209
    %v243 = vunpack.c.l.b16 %v210
    %v244 = vunpack.c.l.b16 %v211
    %v245 = vunpack.c.l.b16 %v212
    %v246 = vunpack.c.l.b16 %v213
    %v247 = vunpack.c.l.b16 %v214
    %v248 = vunpack.c.l.b16 %v215
    %v249 = vunpack.c.l.b16 %v216
    %v250 = vunpack.c.l.b16 %v217
    %v251 = vunpack.c.l.b16 %v218
    %v252 = vunpack.c.l.b16 %v219
    %v253 = vunpack.c.l.b16 %v220
    %v254 = vunpack.c.l.b16 %v221
    %v255 = vpack.c.b16 %v240, %v239
    %v256 = vpack.c.b16 %v242, %v241
    %v257 = vpack.c.b16 %v244, %v243
    %v258 = vpack.c.b16 %v246, %v245
    %v259 = vpack.c.b16 %v248, %v247
    %v260 = vpack.c.b16 %v250, %v249
    %v261 = vpack.c.b16 %v252, %v251
    %v262 = vpack.c.b16 %v254, %v253
    %271 = vmatpush.bf16.msra.mxu0 %v262
    %272 = vmatpush.bf16.msra.mxu0 %v261
    %273 = vmatpush.bf16.msra.mxu0 %v260
    %274 = vmatpush.bf16.msra.mxu0 %v259
    %275 = vmatpush.bf16.msra.mxu0 %v258
    %276 = vmatpush.bf16.msra.mxu0 %v257
    %277 = vmatpush.bf16.msra.mxu0 %v256
    %278 = vmatpush.bf16.msra.mxu0 %v255
    %279 = vmatmul.bf16.gmra.mxu0 %v204
    %v280 = vpop.f32.mrf.mxu0
    %v281 = vadd.f32 %v222, %v280
    %v282 = vpop.f32.mrf.mxu0
    %283 = vdwg.mxu0
    %v284 = vlaneseq
    %v285 = vshrl.u32 %v284, 7
    %s286 = smul.u32 0, 8
    %v287 = vstv %s286
    %v288 = vadd.s32 %v285, %v287
    %vm289 = vcmp.lt.s32.totalorder %v288, 8
    %v290 = vsel %vm289, 1, 0
    %v291 = vcvt.s32.f32 %v290
    %v292 = vmul.f32 %v281, %v291
    %v293 = vld [vmem:[#allocation2] sm:$0x1]
    %v294 = vrot.slane %v292, 4
    %v295 = vadd.f32 %v292, %v294
    %v296 = vrot.slane %v295, 2
    %v297 = vadd.f32 %v295, %v296
    %v298 = vrot.slane %v297, 1
    %v299 = vadd.f32 %v297, %v298
    %v300 = vadd.f32 %v293, %v299
    %301 = vst [vmem:[#allocation2] sm:$0x1] %v300
    %v302 = vld [vmem:[#allocation2 + $0x1] sm:$0x1]
    %v303 = vmul.f32 %v292, %v292
    %v304 = vrot.slane %v303, 4
    %v305 = vadd.f32 %v303, %v304
    %v306 = vrot.slane %v305, 2
    %v307 = vadd.f32 %v305, %v306
    %v308 = vrot.slane %v307, 1
    %v309 = vadd.f32 %v307, %v308
    %v310 = vadd.f32 %v302, %v309
    %311 = vst [vmem:[#allocation2 + $0x1] sm:$0x1] %v310
    %v312 = vpack.c.bf16 %v281, %v281
    %s313 = scalar_lea.vmem [#allocation3], 192
    %v314 = vld [vmem:[%s313] sm:$0xf]
    %v315 = vld [vmem:[%s313 + $0x4] sm:$0xf]
    %v316 = vld [vmem:[%s313 + $0x8] sm:$0xf]
    %v317 = vld [vmem:[%s313 + $0xc] sm:$0xf]
    %v318 = vld [vmem:[%s313 + $0x10] sm:$0xf]
    %v319 = vld [vmem:[%s313 + $0x14] sm:$0xf]
    %v320 = vld [vmem:[%s313 + $0x18] sm:$0xf]
    %v321 = vld [vmem:[%s313 + $0x1c] sm:$0xf]
    %v322 = vld [vmem:[%s313 + $0x20] sm:$0xf]
    %v323 = vld [vmem:[%s313 + $0x24] sm:$0xf]
    %v324 = vld [vmem:[%s313 + $0x28] sm:$0xf]
    %v325 = vld [vmem:[%s313 + $0x2c] sm:$0xf]
    %v326 = vld [vmem:[%s313 + $0x30] sm:$0xf]
    %v327 = vld [vmem:[%s313 + $0x34] sm:$0xf]
    %v328 = vld [vmem:[%s313 + $0x38] sm:$0xf]
    %v329 = vld [vmem:[%s313 + $0x3c] sm:$0xf]
    %v330 = vperm.slane %v41, 3
    %v347 = vunpack.c.l.b16 %v314
    %v348 = vunpack.c.l.b16 %v315
    %v349 = vunpack.c.l.b16 %v316
    %v350 = vunpack.c.l.b16 %v317
    %v351 = vunpack.c.l.b16 %v318
    %v352 = vunpack.c.l.b16 %v319
    %v353 = vunpack.c.l.b16 %v320
    %v354 = vunpack.c.l.b16 %v321
    %v355 = vunpack.c.l.b16 %v322
    %v356 = vunpack.c.l.b16 %v323
    %v357 = vunpack.c.l.b16 %v324
    %v358 = vunpack.c.l.b16 %v325
    %v359 = vunpack.c.l.b16 %v326
    %v360 = vunpack.c.l.b16 %v327
    %v361 = vunpack.c.l.b16 %v328
    %v362 = vunpack.c.l.b16 %v329
    %v363 = vpack.c.b16 %v348, %v347
    %v364 = vpack.c.b16 %v350, %v349
    %v365 = vpack.c.b16 %v352, %v351
    %v366 = vpack.c.b16 %v354, %v353
    %v367 = vpack.c.b16 %v356, %v355
    %v368 = vpack.c.b16 %v358, %v357
    %v369 = vpack.c.b16 %v360, %v359
    %v370 = vpack.c.b16 %v362, %v361
    %379 = vmatpush.bf16.msra.mxu0 %v370
    %380 = vmatpush.bf16.msra.mxu0 %v369
    %381 = vmatpush.bf16.msra.mxu0 %v368
    %382 = vmatpush.bf16.msra.mxu0 %v367
    %383 = vmatpush.bf16.msra.mxu0 %v366
    %384 = vmatpush.bf16.msra.mxu0 %v365
    %385 = vmatpush.bf16.msra.mxu0 %v364
    %386 = vmatpush.bf16.msra.mxu0 %v363
    %387 = vmatmul.bf16.gmra.mxu0 %v312
    %v388 = vpop.f32.mrf.mxu0
    %v389 = vadd.f32 %v330, %v388
    %v390 = vpop.f32.mrf.mxu0
    %391 = vdwg.mxu0
    %v392 = vmax.f32 %v389, 0.0
    %v393 = vpack.c.bf16 %v392, %v392
    %s394 = scalar_lea.vmem [#allocation3], 256
    %v395 = vld [vmem:[%s394] sm:$0xf]
    %v396 = vld [vmem:[%s394 + $0x4] sm:$0xf]
    %v397 = vld [vmem:[%s394 + $0x8] sm:$0xf]
    %v398 = vld [vmem:[%s394 + $0xc] sm:$0xf]
    %v399 = vld [vmem:[%s394 + $0x10] sm:$0xf]
    %v400 = vld [vmem:[%s394 + $0x14] sm:$0xf]
    %v401 = vld [vmem:[%s394 + $0x18] sm:$0xf]
    %v402 = vld [vmem:[%s394 + $0x1c] sm:$0xf]
    %v403 = vld [vmem:[%s394 + $0x20] sm:$0xf]
    %v404 = vld [vmem:[%s394 + $0x24] sm:$0xf]
    %v405 = vld [vmem:[%s394 + $0x28] sm:$0xf]
    %v406 = vld [vmem:[%s394 + $0x2c] sm:$0xf]
    %v407 = vld [vmem:[%s394 + $0x30] sm:$0xf]
    %v408 = vld [vmem:[%s394 + $0x34] sm:$0xf]
    %v409 = vld [vmem:[%s394 + $0x38] sm:$0xf]
    %v410 = vld [vmem:[%s394 + $0x3c] sm:$0xf]
    %v411 = vperm.slane %v41, 4
    %v428 = vunpack.c.l.b16 %v395
    %v429 = vunpack.c.l.b16 %v396
    %v430 = vunpack.c.l.b16 %v397
    %v431 = vunpack.c.l.b16 %v398
    %v432 = vunpack.c.l.b16 %v399
    %v433 = vunpack.c.l.b16 %v400
    %v434 = vunpack.c.l.b16 %v401
    %v435 = vunpack.c.l.b16 %v402
    %v436 = vunpack.c.l.b16 %v403
    %v437 = vunpack.c.l.b16 %v404
    %v438 = vunpack.c.l.b16 %v405
    %v439 = vunpack.c.l.b16 %v406
    %v440 = vunpack.c.l.b16 %v407
    %v441 = vunpack.c.l.b16 %v408
    %v442 = vunpack.c.l.b16 %v409
    %v443 = vunpack.c.l.b16 %v410
    %v444 = vpack.c.b16 %v429, %v428
    %v445 = vpack.c.b16 %v431, %v430
    %v446 = vpack.c.b16 %v433, %v432
    %v447 = vpack.c.b16 %v435, %v434
    %v448 = vpack.c.b16 %v437, %v436
    %v449 = vpack.c.b16 %v439, %v438
    %v450 = vpack.c.b16 %v441, %v440
    %v451 = vpack.c.b16 %v443, %v442
    %460 = vmatpush.bf16.msra.mxu0 %v451
    %461 = vmatpush.bf16.msra.mxu0 %v450
    %462 = vmatpush.bf16.msra.mxu0 %v449
    %463 = vmatpush.bf16.msra.mxu0 %v448
    %464 = vmatpush.bf16.msra.mxu0 %v447
    %465 = vmatpush.bf16.msra.mxu0 %v446
    %466 = vmatpush.bf16.msra.mxu0 %v445
    %467 = vmatpush.bf16.msra.mxu0 %v444
    %468 = vmatmul.bf16.gmra.mxu0 %v393
    %v469 = vpop.f32.mrf.mxu0
    %v470 = vadd.f32 %v411, %v469
    %v471 = vpop.f32.mrf.mxu0
    %472 = vdwg.mxu0
    %v473 = vmax.f32 %v470, 0.0
    %v474 = vpack.c.bf16 %v473, %v473
    %s475 = scalar_lea.vmem [#allocation3], 320
    %v476 = vld [vmem:[%s475] sm:$0xf]
    %v477 = vld [vmem:[%s475 + $0x4] sm:$0xf]
    %v478 = vld [vmem:[%s475 + $0x8] sm:$0xf]
    %v479 = vld [vmem:[%s475 + $0xc] sm:$0xf]
    %v480 = vld [vmem:[%s475 + $0x10] sm:$0xf]
    %v481 = vld [vmem:[%s475 + $0x14] sm:$0xf]
    %v482 = vld [vmem:[%s475 + $0x18] sm:$0xf]
    %v483 = vld [vmem:[%s475 + $0x1c] sm:$0xf]
    %v484 = vld [vmem:[%s475 + $0x20] sm:$0xf]
    %v485 = vld [vmem:[%s475 + $0x24] sm:$0xf]
    %v486 = vld [vmem:[%s475 + $0x28] sm:$0xf]
    %v487 = vld [vmem:[%s475 + $0x2c] sm:$0xf]
    %v488 = vld [vmem:[%s475 + $0x30] sm:$0xf]
    %v489 = vld [vmem:[%s475 + $0x34] sm:$0xf]
    %v490 = vld [vmem:[%s475 + $0x38] sm:$0xf]
    %v491 = vld [vmem:[%s475 + $0x3c] sm:$0xf]
    %v492 = vperm.slane %v41, 5
    %v509 = vunpack.c.l.b16 %v476
    %v510 = vunpack.c.l.b16 %v477
    %v511 = vunpack.c.l.b16 %v478
    %v512 = vunpack.c.l.b16 %v479
    %v513 = vunpack.c.l.b16 %v480
    %v514 = vunpack.c.l.b16 %v481
    %v515 = vunpack.c.l.b16 %v482
    %v516 = vunpack.c.l.b16 %v483
    %v517 = vunpack.c.l.b16 %v484
    %v518 = vunpack.c.l.b16 %v485
    %v519 = vunpack.c.l.b16 %v486
    %v520 = vunpack.c.l.b16 %v487
    %v521 = vunpack.c.l.b16 %v488
    %v522 = vunpack.c.l.b16 %v489
    %v523 = vunpack.c.l.b16 %v490
    %v524 = vunpack.c.l.b16 %v491
    %v525 = vpack.c.b16 %v510, %v509
    %v526 = vpack.c.b16 %v512, %v511
    %v527 = vpack.c.b16 %v514, %v513
    %v528 = vpack.c.b16 %v516, %v515
    %v529 = vpack.c.b16 %v518, %v517
    %v530 = vpack.c.b16 %v520, %v519
    %v531 = vpack.c.b16 %v522, %v521
    %v532 = vpack.c.b16 %v524, %v523
    %541 = vmatpush.bf16.msra.mxu0 %v532
    %542 = vmatpush.bf16.msra.mxu0 %v531
    %543 = vmatpush.bf16.msra.mxu0 %v530
    %544 = vmatpush.bf16.msra.mxu0 %v529
    %545 = vmatpush.bf16.msra.mxu0 %v528
    %546 = vmatpush.bf16.msra.mxu0 %v527
    %547 = vmatpush.bf16.msra.mxu0 %v526
    %548 = vmatpush.bf16.msra.mxu0 %v525
    %549 = vmatmul.bf16.gmra.mxu0 %v474
    %v550 = vpop.f32.mrf.mxu0
    %v551 = vadd.f32 %v492, %v550
    %v552 = vpop.f32.mrf.mxu0
    %553 = vdwg.mxu0
    %v554 = vmul.f32 %v551, 0.5
    %v555 = vtanh.pop %v554
    %v556 = vmul.f32 %v555, 0.5
    %v557 = vadd.f32 %v556, 0.5
    %558 = vst [vmem:[#allocation6] sm:$0xff] %v281
    %559 = vst [vmem:[#allocation7] sm:$0xff] %v557
    // Predicated region
    $region22: #{ae_forward.1} parent=1 // pred_check
      %p560 = pneg %p35
    $region23: #{ae_forward.1} parent=1 // pred_check_branch
      %562 = sbr.rel (%p560) target = $region25
    $region24: #{ae_forward.1} parent=1 // pred_region
      %v563 = vld [vmem:[#allocation2] sm:$0x1]
      %v564 = vld [vmem:[#allocation2 + $0x1] sm:$0x1]
      %v565 = vmul.f32 %v563, 0.125
      %v566 = vmul.f32 %v563, %v565
      %v567 = vsub.f32 %v564, %v566
      %v568 = vmul.f32 %v567, 0.14285715
      %v569 = vmax.f32 %v568, 0.0
      %v570 = vrsqrt.pop %v569
      %v571 = vmul.f32 %v570, %v569
      %v572 = vmul.f32 %v571, %v570
      %v573 = vmul.f32 0.5, %v572
      %v574 = vsub.f32 1.5, %v573
      %v575 = vmul.f32 %v570, %v574
      %v576 = vmul.f32 %v569, %v575
      %vm577 = vcmp.eq.f32.partialorder %v569, inf
      %v578 = vsel %vm577, %v569, %v576
      %vm579 = vcmp.eq.f32.partialorder %v569, 0.0
      %v580 = vand.u32 %v569, 2147483648
      %v581 = vsel %vm579, %v580, %v578
      %582 = vst [vmem:[%s5] sm:$0x1] %v581
      %583 = vst [vmem:[%s5 + $0x1] sm:$0x1] %v565
    $region25: #{ae_forward.1} parent=1 // pred_fallthru
      _
    // Predicated region
    $region26: #{ae_forward.1} parent=1 // pred_check
      _
    $region27: #{ae_forward.1} parent=1 // pred_check_branch
      %585 = sbr.rel (0) target = $region29
    $region28: #{ae_forward.1} parent=1 // pred_region
      %587 = vsyncadd [#allocation5], 0
      %s589 = sshll.u32 [#allocation6], 4
      %s590 = int_to_ptr.vmem [resolvable:$true] %s589
      %s591 = sshll.u32 %s3, 4
      %s592 = int_to_ptr.hbm [resolvable:$true] %s591
      %594 = dma.vmem_to_hbm [thread:$0]  %s590, 128, %s592, [#allocation5]
    $region29: #{ae_forward.1} parent=1 // pred_fallthru
      _
    // Predicated region
    $region30: #{ae_forward.1} parent=1 // pred_check
      _
    $region31: #{ae_forward.1} parent=1 // pred_check_branch
      %596 = sbr.rel (0) target = $region33
    $region32: #{ae_forward.1} parent=1 // pred_region
      %598 = vsyncadd [#allocation8], 0
      %s600 = sshll.u32 [#allocation7], 4
      %s601 = int_to_ptr.vmem [resolvable:$true] %s600
      %s602 = sshll.u32 %s4, 4
      %s603 = int_to_ptr.hbm [resolvable:$true] %s602
      %605 = dma.vmem_to_hbm [thread:$0]  %s601, 128, %s603, [#allocation8]
    $region33: #{ae_forward.1} parent=1 // pred_fallthru
      _
    // Predicated region
    $region34: #{ae_forward.1} parent=1 // pred_check
      _
    $region35: #{ae_forward.1} parent=1 // pred_check_branch
      %607 = sbr.rel (0) target = $region37
    $region36: #{ae_forward.1} parent=1 // pred_region
      _
    $region37: #{ae_forward.1} parent=1 // pred_fallthru
      _
    // Predicated region
    $region38: #{ae_forward.1} parent=1 // pred_check
      _
    $region39: #{ae_forward.1} parent=1 // pred_check_branch
      %609 = sbr.rel (0) target = $region41
    $region40: #{ae_forward.1} parent=1 // pred_region
      %611 = dma.done [#allocation5], 128
    $region41: #{ae_forward.1} parent=1 // pred_fallthru
      _
    // Predicated region
    $region42: #{ae_forward.1} parent=1 // pred_check
      _
    $region43: #{ae_forward.1} parent=1 // pred_check_branch
      %613 = sbr.rel (0) target = $region45
    $region44: #{ae_forward.1} parent=1 // pred_region
      %615 = dma.done [#allocation8], 128
    $region45: #{ae_forward.1} parent=1 // pred_fallthru
      _
    // Predicated region
    $region46: #{ae_forward.1} parent=1 // pred_check
      _
    $region47: #{ae_forward.1} parent=1 // pred_check_branch
      %617 = sbr.rel (0) target = $region49
    $region48: #{ae_forward.1} parent=1 // pred_region
      _
    $region49: #{ae_forward.1} parent=1 // pred_fallthru
      _
    %618 = vsyncpa [#allocation4], 1
    %619 = vsyncpa [#allocation5], 1
    %620 = vsyncpa [#allocation8], 1

</llo_original>
